<compile_context>
chip_gen: v7x
topology: tpu7x:2x2x1
jax: 0.10.0
libtpu: 0.0.40
codegen_flags: <defaults>
</compile_context>

<pallas_src>
import jax
import jax.numpy as jnp
from jax.experimental import pallas as pl
from jax.experimental.pallas import tpu as pltpu


def _class_head_kernel(w_ref, x_ref, b_ref, o_ref):
    # w_ref: (OutCp, C), x_ref: (C, thw), b_ref: (OutCp, 1), o_ref: (OutCp, thw)
    acc = jnp.dot(w_ref[...], x_ref[...], preferred_element_type=jnp.float32)
    o_ref[...] = (acc + b_ref[...]).astype(o_ref.dtype)


def _round_up(x, m):
    return ((x + m - 1) // m) * m


def _cdiv(a, b):
    return -(-a // b)


def _pick_tile_hw(hw, n_batch, max_tile_hw):
    """Lane-dense spatial tile: multiple of 128, <= max_tile_hw, >= 128."""
    max_tile_hw = max(128, (max_tile_hw // 128) * 128)
    thw = min(max_tile_hw, _round_up(hw, 128))
    # v7x has 2 TensorCores: if the batch alone doesn't provide >= 2 parallel
    # grid steps (N == 1 on a small pyramid level), split the spatial axis.
    if n_batch * _cdiv(hw, thw) < 2 and hw > 128:
        thw = min(thw, _round_up(_cdiv(hw, 2), 128))
    return thw


def class_head_forward(x_nchw, weight, bias, num_anchors, *, max_tile_hw=2048):
    """x_nchw: (N, C, H, W); weight: (OutC, C) or (OutC, C, 1, 1); bias: (OutC,)."""
    N, C, H, W = x_nchw.shape
    if weight.ndim == 4:                      # PyTorch Conv2d layout
        weight = weight.reshape(weight.shape[0], weight.shape[1])
    out_c = weight.shape[0]
    assert out_c == num_anchors * 2
    HW = H * W
    dtype = x_nchw.dtype

    # NCHW -> (N, C, H*W): a pure reshape, NO transpose / extra HBM traffic.
    x_slab = x_nchw.reshape(N, C, HW)

    # Pad OutC (=6) up to 8 sublanes so output stores are unmasked; padded
    # weight/bias rows are zero and sliced off afterwards.  Cast the tiny
    # weight/bias to x's dtype (free); do NOT cast x here.
    out_cp = _round_up(out_c, 8)
    w_pad = jnp.zeros((out_cp, C), dtype).at[:out_c, :].set(weight.astype(dtype))
    b_pad = jnp.zeros((out_cp, 1), dtype).at[:out_c, 0].set(bias.astype(dtype))

    thw = _pick_tile_hw(HW, N, max_tile_hw)
    grid = (N, pl.cdiv(HW, thw))

    # Deterministic VMEM budget: 2x x-tile + 2x out-tile + 2x weight/bias.
    itemsize = jnp.dtype(dtype).itemsize
    budget = (2 * C * thw + 2 * out_cp * thw + 2 * out_cp * (C + 1)) * itemsize
    vmem_limit = int(min(max(2 * budget, 16 * 1024 * 1024), 32 * 1024 * 1024))

    out_slab = pl.pallas_call(
        _class_head_kernel,
        out_shape=jax.ShapeDtypeStruct((N, out_cp, HW), dtype),
        grid_spec=pltpu.PrefetchScalarGridSpec(
            num_scalar_prefetch=0,
            grid=grid,
            in_specs=[
                # weight / bias: constant index_map -> resident across steps
                pl.BlockSpec((out_cp, C), lambda n, s: (0, 0)),
                # x slab tile: (C, thw), spatial dim on the lane axis; the
                # ragged last tile (cdiv grid) is masked by Pallas.
                pl.BlockSpec((None, C, thw), lambda n, s: (n, 0, s)),
                pl.BlockSpec((out_cp, 1), lambda n, s: (0, 0)),
            ],
            out_specs=pl.BlockSpec((None, out_cp, thw), lambda n, s: (n, 0, s)),
        ),
        compiler_params=pltpu.CompilerParams(
            dimension_semantics=("parallel", "parallel"),
            vmem_limit_bytes=vmem_limit),
    )(w_pad, x_slab, b_pad)

    # Drop the channel padding, then permute only the tiny OutC axis:
    # (N, OutC, HW) -> (N, HW, OutC) -> (N, HW*num_anchors, 2)
    out = jnp.transpose(out_slab[:, :out_c, :], (0, 2, 1))
    return out.reshape(N, HW * num_anchors, 2)


if __name__ == "__main__":
    # Small shapes consistent with the module (inchannels scaled down).
    # H*W = 324 is deliberately NOT a multiple of 128 to exercise the
    # cdiv grid / masked last tile.
    N, C_in, H, W = 2, 32, 18, 18
    num_anchors = 3
    out_c = num_anchors * 2

    key = jax.random.PRNGKey(0)
    kx, kw, kb = jax.random.split(key, 3)
    x = jax.random.normal(kx, (N, C_in, H, W), dtype=jnp.float32)
    # Conv2d 1x1: weight (OutC, C_in, 1, 1) -> (OutC, C_in)
    weight = jax.random.normal(kw, (out_c, C_in), dtype=jnp.float32) * 0.05
    bias = jax.random.normal(kb, (out_c,), dtype=jnp.float32) * 0.05

    # Reference in plain JAX (same math as the PyTorch forward).
    ref = (jnp.einsum("nchw,oc->nhwo", x, weight) + bias)
    ref = ref.reshape(N, H * W * num_anchors, 2)

    # Default tiling (single spatial tile per image here).
    out = jax.block_until_ready(class_head_forward(x, weight, bias, num_anchors))
    assert out.shape == (N, H * W * num_anchors, 2)
    assert jnp.allclose(out, ref, atol=1e-4, rtol=1e-4)

    # Force the multi-tile cdiv path with a ragged last spatial tile.
    out_small = jax.block_until_ready(
        class_head_forward(x, weight, bias, num_anchors, max_tile_hw=128))
    assert jnp.allclose(out_small, ref, atol=1e-4, rtol=1e-4)

    print("KERNEL_OK")
</pallas_src>

<mosaic_0001>
module attributes {stable_mosaic.version = 11 : i64} {
  func.func @_class_head_kernel(%arg0: i32, %arg1: i32, %arg2: memref<8x32xf32, #tpu.memory_space<vmem>>, %arg3: memref<1x32x384xf32, #tpu.memory_space<vmem>>, %arg4: memref<8x1xf32, #tpu.memory_space<vmem>>, %arg5: memref<1x8x384xf32, #tpu.memory_space<vmem>>) attributes {dimension_semantics = [#tpu.dimension_semantics<parallel>, #tpu.dimension_semantics<parallel>], iteration_bounds = array<i64: 2, 1>, scalar_prefetch = 0 : i64, scratch_operands = 0 : i64, tpu.core_type = #tpu.core_type<tc>, window_params = [{pipeline_mode = #tpu.pipeline_mode<synchronous>, transform_indices = @transform_0, window_bounds = array<i64: 8, 32>}, {transform_indices = @transform_1, window_bounds = array<i64: 1, 32, 384>}, {pipeline_mode = #tpu.pipeline_mode<synchronous>, transform_indices = @transform_2, window_bounds = array<i64: 8, 1>}, {transform_indices = @transform_3, window_bounds = array<i64: 1, 8, 384>}]} {
    %c0 = arith.constant 0 : index
    %c0_0 = arith.constant 0 : index
    %0 = vector.load %arg2[%c0, %c0_0] : memref<8x32xf32, #tpu.memory_space<vmem>>, vector<8x32xf32>
    %c0_1 = arith.constant 0 : index
    %c0_2 = arith.constant 0 : index
    %c0_3 = arith.constant 0 : index
    %1 = vector.load %arg3[%c0_1, %c0_2, %c0_3] : memref<1x32x384xf32, #tpu.memory_space<vmem>>, vector<1x32x384xf32>
    %2 = vector.shape_cast %1 : vector<1x32x384xf32> to vector<32x384xf32>
    %cst = arith.constant dense<0.000000e+00> : vector<8x384xf32>
    %3 = tpu.matmul %0, %2, %cst {dimension_numbers = #tpu.dot_dimension_numbers<[1], [0], [0], [1], [0, 0, 1, 1], [], []>} : vector<8x32xf32>, vector<32x384xf32>, vector<8x384xf32> -> vector<8x384xf32>
    %c0_4 = arith.constant 0 : index
    %c0_5 = arith.constant 0 : index
    %4 = vector.load %arg4[%c0_4, %c0_5] : memref<8x1xf32, #tpu.memory_space<vmem>>, vector<8x1xf32>
    %5 = vector.broadcast %4 : vector<8x1xf32> to vector<8x384xf32>
    %6 = arith.addf %3, %5 : vector<8x384xf32>
    %c0_6 = arith.constant 0 : index
    %c0_7 = arith.constant 0 : index
    %c0_8 = arith.constant 0 : index
    %7 = vector.load %arg5[%c0_6, %c0_7, %c0_8] : memref<1x8x384xf32, #tpu.memory_space<vmem>>, vector<1x8x384xf32>
    %8 = vector.shape_cast %7 : vector<1x8x384xf32> to vector<8x384xf32>
    %9 = vector.shape_cast %6 : vector<8x384xf32> to vector<1x8x384xf32>
    tpu.vector_store %arg5[%c0_6, %c0_7, %c0_8], %9 {strides = array<i32>} : memref<1x8x384xf32, #tpu.memory_space<vmem>>, vector<1x8x384xf32>,
    return
  }
  func.func @transform_0(%arg0: i32, %arg1: i32) -> (i32, i32) {
    %c0_i32 = arith.constant 0 : i32
    %c0_i32_0 = arith.constant 0 : i32
    %c0_i32_1 = arith.constant 0 : i32
    return %c0_i32, %c0_i32_0 : i32, i32
  }
  func.func @transform_1(%arg0: i32, %arg1: i32) -> (i32, i32, i32) {
    %c0_i32 = arith.constant 0 : i32
    %c0_i32_0 = arith.constant 0 : i32
    return %arg0, %c0_i32, %arg1 : i32, i32, i32
  }
  func.func @transform_2(%arg0: i32, %arg1: i32) -> (i32, i32) {
    %c0_i32 = arith.constant 0 : i32
    %c0_i32_0 = arith.constant 0 : i32
    %c0_i32_1 = arith.constant 0 : i32
    return %c0_i32, %c0_i32_0 : i32, i32
  }
  func.func @transform_3(%arg0: i32, %arg1: i32) -> (i32, i32, i32) {
    %c0_i32 = arith.constant 0 : i32
    %c0_i32_0 = arith.constant 0 : i32
    return %arg0, %c0_i32, %arg1 : i32, i32, i32
  }
}

</mosaic_0001>

<llo_original>
// kernel: tpu_custom_call.1
$region0: #{tpu_custom_call.1}
  #allocation0 [shape = 'u32[]', space=smem, size = 0x4, offset = 0x4, fixed_abs, tag = 'smem constant byte address 0x4 - core index']
  #allocation1 [shape = 'u32[144,128]{1,0:T(1,128)}', space=vmem, size = 0x12000, scoped, tag = 'internal scratch']
  %s0 = inlined_call_operand.vmem [shape: f32[8,32], index: 0, kind: input, shape index: {}]
  %s1 = inlined_call_operand.hbm [shape: f32[2,32,324], index: 1, kind: input, shape index: {}]
  %s2 = inlined_call_operand.vmem [shape: f32[8,1], index: 2, kind: input, shape index: {}]
  %s3 = inlined_call_operand.hbm [shape: f32[2,8,324], index: 3, kind: output, shape index: {}]
  %s4 = sld [smem:[#allocation0]]
  $region49: #{tpu_custom_call.1} parent=0
    _
  %s6 = ssub.s32 1, %s4
  %s7 = scalar_select 0, %s6, %s4
  $region1: #{tpu_custom_call.1} parent=0
    #allocation2 [shape = 'u8[98304]{0}', space=vmem, size = 0x18000, scoped, tag = 'input window, operand 1']
    #allocation3 [shape = 's32[2]{0}', space=sflag, size = 0x8, scoped, tag = 'scoped memory for tpu_custom_call.1']
    #allocation4 [shape = 's32[2]{0}', space=sflag, size = 0x8, scoped, tag = 'scoped memory for tpu_custom_call.1']
    #allocation5 [shape = 'u8[24576]{0}', space=vmem, size = 0x6000, scoped, tag = 'output window, operand 0']
    %8 = vsyncpa [#allocation3], 0
    %s9 = scalar_lea.sflag [#allocation3], 1
    %10 = vsyncpa %s9, 0
    %11 = vsyncpa [#allocation4], 0
    %s12 = scalar_lea.sflag [#allocation4], 1
    %13 = vsyncpa %s12, 0
    loop: start=0, step=1, limit=4
    $region2: #{tpu_custom_call.1} parent=1 // loop_pre_header
      _
    $region3: #{tpu_custom_call.1} parent=1 // loop_header
      %s15 = sphi 0, %s19
      %p16 = scmp.ge.s32.totalorder %s15, 4
      %s22 = sphi 0, %s34
      %s23 = sphi 0, %s30
      %s24 = sphi 0, %s22
      %s25 = sphi 0, %s23
      %s26 = sphi 0, %s24
      %s27 = sphi 0, %s25
      %s35 = sphi 0, %s35
      %s37 = sphi 0, %s35
      %s38 = sphi 0, %s37
      %s52 = sphi 0, %s38
      %s60 = sphi 0, %s62
      %s63 = sphi 0, %s60
      %s64 = sphi 0, %s63
      %s80 = sphi 0, %s64
      %s84 = sphi 0, %s84
      %s86 = sphi 0, %s84
      %s87 = sphi 0, %s86
      %s101 = sphi 0, %s87
      %s109 = sphi 0, %s111
      %s112 = sphi 0, %s109
      %s113 = sphi 0, %s112
      %s129 = sphi 0, %s113
    $region4: #{tpu_custom_call.1} parent=1 // loop_header_branch
      %18 = sbr.rel (%p16) target = $region8
    $region5: #{tpu_custom_call.1} parent=1 // loop_body
      %s20 = ssub.s32 %s15, 1
      %s21 = ssub.s32 %s15, 2
      %s28 = sadd.s32 1, %s23
      %p29 = scmp.ge.s32.totalorder %s28, 1
      %s30 = scalar_select %p29, 0, %s28
      %s31 = sadd.s32 1, %s22
      %s32 = scalar_select %p29, %s31, %s22
      %p33 = scmp.ge.s32.totalorder %s32, 2
      %s34 = scalar_select %p33, 0, %s32
      %s36 = sadd.s32 %s35, 1
      %p39 = scmp.eq.s32.totalorder %s15, 1
      %p40 = scmp.ne.s32.totalorder %s35, %s37
      %p41 = scmp.eq.s32.totalorder %s15, 0
      %p42 = por %p40, %p41
      %p43 = scmp.ne.s32.totalorder %s35, %s37
      %p44 = scmp.eq.s32.totalorder %s20, 1
      %p45 = por %p43, %p44
      %p46 = scmp.ne.s32.totalorder %s37, %s38
      %p47 = scmp.eq.s32.totalorder %s20, 0
      %p48 = por %p46, %p47
      %p49 = scmp.ne.s32.totalorder %s37, %s38
      %p50 = scmp.eq.s32.totalorder %s21, 1
      %p51 = por %p49, %p50
      %p53 = scmp.ne.s32.totalorder %s38, %s52
      %p54 = scmp.eq.s32.totalorder %s21, 0
      %p55 = por %p53, %p54
      %s56 = ssub.s32 %s22, %s34
      %s57 = ssub.s32 %s23, %s30
      %s58 = sor.u32 %s56, %s57
      %p59 = scmp.eq.s32.totalorder %s58, 0
      %s61 = sadd.s32 %s60, 1
      %s62 = scalar_select %p59, %s60, %s61
      %p65 = pneg %p59
      %p66 = scmp.eq.s32.totalorder %s15, 1
      %p67 = por %p65, %p66
      %p68 = scmp.ne.s32.totalorder %s60, %s63
      %p69 = scmp.eq.s32.totalorder %s15, 0
      %p70 = por %p68, %p69
      %p71 = scmp.ne.s32.totalorder %s60, %s63
      %p72 = scmp.eq.s32.totalorder %s20, 1
      %p73 = por %p71, %p72
      %p74 = scmp.ne.s32.totalorder %s63, %s64
      %p75 = scmp.eq.s32.totalorder %s20, 0
      %p76 = por %p74, %p75
      %p77 = scmp.ne.s32.totalorder %s63, %s64
      %p78 = scmp.eq.s32.totalorder %s21, 1
      %p79 = por %p77, %p78
      %p81 = scmp.ne.s32.totalorder %s64, %s80
      %p82 = scmp.eq.s32.totalorder %s21, 0
      %p83 = por %p81, %p82
      %s85 = sadd.s32 %s84, 1
      %p88 = scmp.eq.s32.totalorder %s15, 1
      %p89 = scmp.ne.s32.totalorder %s84, %s86
      %p90 = scmp.eq.s32.totalorder %s15, 0
      %p91 = por %p89, %p90
      %p92 = scmp.ne.s32.totalorder %s84, %s86
      %p93 = scmp.eq.s32.totalorder %s20, 1
      %p94 = por %p92, %p93
      %p95 = scmp.ne.s32.totalorder %s86, %s87
      %p96 = scmp.eq.s32.totalorder %s20, 0
      %p97 = por %p95, %p96
      %p98 = scmp.ne.s32.totalorder %s86, %s87
      %p99 = scmp.eq.s32.totalorder %s21, 1
      %p100 = por %p98, %p99
      %p102 = scmp.ne.s32.totalorder %s87, %s101
      %p103 = scmp.eq.s32.totalorder %s21, 0
      %p104 = por %p102, %p103
      %s105 = ssub.s32 %s22, %s34
      %s106 = ssub.s32 %s23, %s30
      %s107 = sor.u32 %s105, %s106
      %p108 = scmp.eq.s32.totalorder %s107, 0
      %s110 = sadd.s32 %s109, 1
      %s111 = scalar_select %p108, %s109, %s110
      %p114 = pneg %p108
      %p115 = scmp.eq.s32.totalorder %s15, 1
      %p116 = por %p114, %p115
      %p117 = scmp.ne.s32.totalorder %s109, %s112
      %p118 = scmp.eq.s32.totalorder %s15, 0
      %p119 = por %p117, %p118
      %p120 = scmp.ne.s32.totalorder %s109, %s112
      %p121 = scmp.eq.s32.totalorder %s20, 1
      %p122 = por %p120, %p121
      %p123 = scmp.ne.s32.totalorder %s112, %s113
      %p124 = scmp.eq.s32.totalorder %s20, 0
      %p125 = por %p123, %p124
      %p126 = scmp.ne.s32.totalorder %s112, %s113
      %p127 = scmp.eq.s32.totalorder %s21, 1
      %p128 = por %p126, %p127
      %p130 = scmp.ne.s32.totalorder %s113, %s129
      %p131 = scmp.eq.s32.totalorder %s21, 0
      %p132 = por %p130, %p131
      %p133 = scmp.le.s32.totalorder 1, %s15
      %p134 = scmp.lt.s32.totalorder %s15, 3
      %p135 = pnand %p133, %p134
      %p136 = pneg %p135
      // Predicated region
      $region9: #{tpu_custom_call.1} parent=5 // pred_check
        _
      $region10: #{tpu_custom_call.1} parent=5 // pred_check_branch
        %138 = sbr.rel (%p135) target = $region12
      $region11: #{tpu_custom_call.1} parent=5 // pred_region
        %s139 = ssub.s32 %s15, 1
        // Predicated region
        $region13: #{tpu_custom_call.1} parent=11 // pred_check
          %p140 = pneg %p48
        $region14: #{tpu_custom_call.1} parent=11 // pred_check_branch
          %142 = sbr.rel (%p140) target = $region16
        $region15: #{tpu_custom_call.1} parent=11 // pred_region
          _
        $region16: #{tpu_custom_call.1} parent=11 // pred_fallthru
          _
        // Predicated region
        $region17: #{tpu_custom_call.1} parent=11 // pred_check
          %p143 = pneg %p97
        $region18: #{tpu_custom_call.1} parent=11 // pred_check_branch
          %145 = sbr.rel (%p143) target = $region20
        $region19: #{tpu_custom_call.1} parent=11 // pred_region
          _
        $region20: #{tpu_custom_call.1} parent=11 // pred_fallthru
          _
      $region12: #{tpu_custom_call.1} parent=5 // pred_fallthru
        _
      %p146 = scmp.lt.s32.totalorder %s15, 2
      // Predicated region
      $region21: #{tpu_custom_call.1} parent=5 // pred_check
        %p147 = pneg %p146
      $region22: #{tpu_custom_call.1} parent=5 // pred_check_branch
        %149 = sbr.rel (%p147) target = $region24
      $region23: #{tpu_custom_call.1} parent=5 // pred_region
        // Predicated region
        $region25: #{tpu_custom_call.1} parent=23 // pred_check
          %p150 = pneg %p70
        $region26: #{tpu_custom_call.1} parent=23 // pred_check_branch
          %152 = sbr.rel (%p150) target = $region28
        $region27: #{tpu_custom_call.1} parent=23 // pred_region
          %s153 = sand.u32 %s60, 1
          %s154 = scalar_lea.sflag [#allocation3], %s153
          %s155 = sand.u32 %s60, 1
          %s156 = smul.addr %s155, 96
          %s157 = scalar_lea.vmem [#allocation2], %s156
          %s158 = smul.u32 3, %s23
          %s160 = ssub.s32 1536, 1536
          %161 = vsyncadd %s154, %s160
          %s162 = smul.addr %s22, 12
          %s163 = sadd.s32 %s158, %s162
          %s164 = smul.addr %s163, 128
          %s165 = scalar_lea.hbm %s1, %s164
          %s166 = sshll.u32 %s157, 4
          %s167 = int_to_ptr.vmem [resolvable:$true] %s166
          %172 = dma.hbm_to_vmem [thread:$0]  %s165, 1536, %s167, %s154, 384, 384, 24
        $region28: #{tpu_custom_call.1} parent=23 // pred_fallthru
          _
      $region24: #{tpu_custom_call.1} parent=5 // pred_fallthru
        _
      %p173 = scmp.le.s32.totalorder 1, %s15
      %p174 = scmp.lt.s32.totalorder %s15, 3
      %p175 = pnand %p173, %p174
      %p176 = pneg %p175
      // Predicated region
      $region29: #{tpu_custom_call.1} parent=5 // pred_check
        _
      $region30: #{tpu_custom_call.1} parent=5 // pred_check_branch
        %178 = sbr.rel (%p175) target = $region32
      $region31: #{tpu_custom_call.1} parent=5 // pred_region
        %s179 = ssub.s32 %s15, 1
        %s180 = sand.u32 %s63, 1
        %s181 = scalar_lea.sflag [#allocation3], %s180
        %s182 = sand.u32 %s63, 1
        %s183 = smul.addr %s182, 96
        %s184 = scalar_lea.vmem [#allocation2], %s183
        // Predicated region
        $region33: #{tpu_custom_call.1} parent=31 // pred_check
          %p185 = pneg %p76
        $region34: #{tpu_custom_call.1} parent=31 // pred_check_branch
          %187 = sbr.rel (%p185) target = $region36
        $region35: #{tpu_custom_call.1} parent=31 // pred_region
          %188 = dma.done %s181, 1536
        $region36: #{tpu_custom_call.1} parent=31 // pred_fallthru
          _
        %p189 = pneg %p48
        %p190 = pneg %p45
        %s191 = sand.u32 %s63, 1
        %s192 = scalar_lea.sflag [#allocation3], %s191
        %s193 = sand.u32 %s63, 1
        %s194 = smul.addr %s193, 96
        %s195 = scalar_lea.vmem [#allocation2], %s194
        %p196 = pneg %p76
        %p197 = pneg %p73
        %p198 = pneg %p97
        %p199 = pneg %p94
        %p200 = pneg %p125
        %p201 = pneg %p122
        %s202 = sand.u32 %s112, 1
        %s203 = scalar_lea.sflag [#allocation4], %s202
        %s204 = sand.u32 %s112, 1
        %s205 = smul.addr %s204, 24
        %s206 = scalar_lea.vmem [#allocation5], %s205
        %s207 = smul.u32 3, %s25
        %s208 = smul.u32 3, %s25
        %v209 = vld [vmem:[%s0] sm:$0xff]
        %v210 = vld [vmem:[%s184] sm:$0xff]
        %v211 = vld [vmem:[%s184 + $0x8] sm:$0xff]
        %v212 = vld [vmem:[%s184 + $0x10] sm:$0xff]
        %v213 = vld [vmem:[%s184 + $0x18] sm:$0xff]
        %v214 = vld [vmem:[%s184 + $0x20] sm:$0xff]
        %v215 = vld [vmem:[%s184 + $0x28] sm:$0xff]
        %v216 = vld [vmem:[%s184 + $0x30] sm:$0xff]
        %v217 = vld [vmem:[%s184 + $0x38] sm:$0xff]
        %v218 = vld [vmem:[%s184 + $0x40] sm:$0xff]
        %v219 = vld [vmem:[%s184 + $0x48] sm:$0xff]
        %v220 = vld [vmem:[%s184 + $0x50] sm:$0xff]
        %v221 = vld [vmem:[%s184 + $0x58] sm:$0xff]
        %v222 = vld [vmem:[%s2] sm:$0xff]
        %224 = vset.pattern.permute.xlu0 0
        %225 = vperm.xlu0 %224, %v222
        %v226 = vpop.permute.xlu0 %225
        %vm228 = vcmask 261120
        %v230 = vsel %vm228, %v209, 0
        %232 = vmatprep.subr.mxu0 %v211
        %233 = vmatpush1.msra.mxu0 %v210
        %234 = vmatprep.subr.mxu0 %v214
        %235 = vmatpush1.msra.mxu0 %v213
        %236 = vmatprep.subr.mxu0 %v217
        %237 = vmatpush1.msra.mxu0 %v216
        %238 = vmatprep.subr.mxu0 %v220
        %239 = vmatpush1.msra.mxu0 %v219
        %240 = vmatprep.subr.mxu0 0.0
        %241 = vmatpush1.msra.mxu0 0.0
        %242 = vmatprep.subr.mxu0 0.0
        %243 = vmatpush1.msra.mxu0 0.0
        %244 = vmatprep.subr.mxu0 0.0
        %245 = vmatpush1.msra.mxu0 0.0
        %246 = vmatprep.subr.mxu0 0.0
        %247 = vmatpush1.msra.mxu0 0.0
        %248 = vmatprep.subr.mxu0 0.0
        %249 = vmatpush1.msra.mxu0 0.0
        %250 = vmatprep.subr.mxu0 0.0
        %251 = vmatpush1.msra.mxu0 0.0
        %252 = vmatprep.subr.mxu0 0.0
        %253 = vmatpush1.msra.mxu0 0.0
        %254 = vmatprep.subr.mxu0 0.0
        %255 = vmatpush1.msra.mxu0 0.0
        %256 = vmatprep.subr.mxu0 0.0
        %257 = vmatpush1.msra.mxu0 0.0
        %258 = vmatprep.subr.mxu0 0.0
        %259 = vmatpush1.msra.mxu0 0.0
        %260 = vmatprep.subr.mxu0 0.0
        %261 = vmatpush1.msra.mxu0 0.0
        %262 = vmatprep.subr.mxu0 0.0
        %263 = vmatpush1.msra.mxu0 0.0
        %264 = vmatprep.subr.mxu0 0.0
        %265 = vmatpush1.msra.mxu0 0.0
        %266 = vmatprep.subr.mxu0 0.0
        %267 = vmatpush1.msra.mxu0 0.0
        %268 = vmatprep.subr.mxu0 0.0
        %269 = vmatpush1.msra.mxu0 0.0
        %270 = vmatprep.subr.mxu0 0.0
        %271 = vmatpush1.msra.mxu0 0.0
        %272 = vmatprep.subr.mxu0 0.0
        %273 = vmatpush1.msra.mxu0 0.0
        %274 = vmatprep.subr.mxu0 0.0
        %275 = vmatpush1.msra.mxu0 0.0
        %276 = vmatprep.subr.mxu0 0.0
        %277 = vmatpush1.msra.mxu0 0.0
        %278 = vmatprep.subr.mxu0 0.0
        %279 = vmatpush1.msra.mxu0 0.0
        %280 = vmatprep.subr.mxu0 0.0
        %281 = vmatpush1.msra.mxu0 0.0
        %282 = vmatprep.subr.mxu0 0.0
        %283 = vmatpush1.msra.mxu0 0.0
        %284 = vmatprep.subr.mxu0 0.0
        %285 = vmatpush1.msra.mxu0 0.0
        %286 = vmatprep.subr.mxu0 0.0
        %287 = vmatpush1.msra.mxu0 0.0
        %288 = vmatprep.subr.mxu0 0.0
        %289 = vmatpush1.msra.mxu0 0.0
        %290 = vmatprep.subr.mxu0 0.0
        %291 = vmatpush1.msra.mxu0 0.0
        %292 = vmatprep.subr.mxu0 0.0
        %293 = vmatpush1.msra.mxu0 0.0
        %294 = vmatprep.subr.mxu0 0.0
        %295 = vmatpush1.msra.mxu0 0.0
        %296 = vmatprep.mubr.f32.mxu0 0.0
        %297 = vmatmul.mubr.f32.gmra.mrb[0].mxu0 %v230
        %v298 = vpop.f32.mrb[0].mxu0
        %v299 = vadd.f32 %v226, %v298
        %v300 = vpop.f32.mrb[0].mxu0
        %v301 = vadd.f32 %v226, %v300
        %302 = vdwg.mxu0
        %303 = vmatprep.subr.mxu0 0.0
        %304 = vmatpush1.msra.mxu0 %v212
        %305 = vmatprep.subr.mxu0 0.0
        %306 = vmatpush1.msra.mxu0 %v215
        %307 = vmatprep.subr.mxu0 0.0
        %308 = vmatpush1.msra.mxu0 %v218
        %309 = vmatprep.subr.mxu0 0.0
        %310 = vmatpush1.msra.mxu0 %v221
        %311 = vmatprep.subr.mxu0 0.0
        %312 = vmatpush1.msra.mxu0 0.0
        %313 = vmatprep.subr.mxu0 0.0
        %314 = vmatpush1.msra.mxu0 0.0
        %315 = vmatprep.subr.mxu0 0.0
        %316 = vmatpush1.msra.mxu0 0.0
        %317 = vmatprep.subr.mxu0 0.0
        %318 = vmatpush1.msra.mxu0 0.0
        %319 = vmatprep.subr.mxu0 0.0
        %320 = vmatpush1.msra.mxu0 0.0
        %321 = vmatprep.subr.mxu0 0.0
        %322 = vmatpush1.msra.mxu0 0.0
        %323 = vmatprep.subr.mxu0 0.0
        %324 = vmatpush1.msra.mxu0 0.0
        %325 = vmatprep.subr.mxu0 0.0
        %326 = vmatpush1.msra.mxu0 0.0
        %327 = vmatprep.subr.mxu0 0.0
        %328 = vmatpush1.msra.mxu0 0.0
        %329 = vmatprep.subr.mxu0 0.0
        %330 = vmatpush1.msra.mxu0 0.0
        %331 = vmatprep.subr.mxu0 0.0
        %332 = vmatpush1.msra.mxu0 0.0
        %333 = vmatprep.subr.mxu0 0.0
        %334 = vmatpush1.msra.mxu0 0.0
        %335 = vmatprep.subr.mxu0 0.0
        %336 = vmatpush1.msra.mxu0 0.0
        %337 = vmatprep.subr.mxu0 0.0
        %338 = vmatpush1.msra.mxu0 0.0
        %339 = vmatprep.subr.mxu0 0.0
        %340 = vmatpush1.msra.mxu0 0.0
        %341 = vmatprep.subr.mxu0 0.0
        %342 = vmatpush1.msra.mxu0 0.0
        %343 = vmatprep.subr.mxu0 0.0
        %344 = vmatpush1.msra.mxu0 0.0
        %345 = vmatprep.subr.mxu0 0.0
        %346 = vmatpush1.msra.mxu0 0.0
        %347 = vmatprep.subr.mxu0 0.0
        %348 = vmatpush1.msra.mxu0 0.0
        %349 = vmatprep.subr.mxu0 0.0
        %350 = vmatpush1.msra.mxu0 0.0
        %351 = vmatprep.subr.mxu0 0.0
        %352 = vmatpush1.msra.mxu0 0.0
        %353 = vmatprep.subr.mxu0 0.0
        %354 = vmatpush1.msra.mxu0 0.0
        %355 = vmatprep.subr.mxu0 0.0
        %356 = vmatpush1.msra.mxu0 0.0
        %357 = vmatprep.subr.mxu0 0.0
        %358 = vmatpush1.msra.mxu0 0.0
        %359 = vmatprep.subr.mxu0 0.0
        %360 = vmatpush1.msra.mxu0 0.0
        %361 = vmatprep.subr.mxu0 0.0
        %362 = vmatpush1.msra.mxu0 0.0
        %363 = vmatprep.subr.mxu0 0.0
        %364 = vmatpush1.msra.mxu0 0.0
        %365 = vmatprep.subr.mxu0 0.0
        %366 = vmatpush1.msra.mxu0 0.0
        %367 = vmatprep.mubr.f32.mxu0 0.0
        %368 = vmatmul.mubr.f32.gmra.mrb[0].mxu0 %v230
        %v369 = vpop.f32.mrb[0].mxu0
        %v370 = vadd.f32 %v226, %v369
        %v371 = vpop.f32.mrb[0].mxu0
        %372 = vdwg.mxu0
        %373 = vst [vmem:[%s206] sm:$0xff] %v299
        %374 = vst [vmem:[%s206 + $0x8] sm:$0xff] %v301
        %375 = vst [vmem:[%s206 + $0x10] sm:$0xff] %v370
        %s376 = sand.u32 %s112, 1
        %s377 = scalar_lea.sflag [#allocation4], %s376
        %s378 = sand.u32 %s112, 1
        %s379 = smul.addr %s378, 24
        %s380 = scalar_lea.vmem [#allocation5], %s379
        // Predicated region
        $region37: #{tpu_custom_call.1} parent=31 // pred_check
          %p381 = pneg %p122
        $region38: #{tpu_custom_call.1} parent=31 // pred_check_branch
          %383 = sbr.rel (%p381) target = $region40
        $region39: #{tpu_custom_call.1} parent=31 // pred_region
          %s384 = smul.u32 3, %s25
          %s386 = ssub.s32 384, 384
          %387 = vsyncadd %s377, %s386
          %s388 = smul.addr %s24, 3
          %s389 = sadd.s32 %s384, %s388
          %s390 = smul.addr %s389, 128
          %s391 = scalar_lea.hbm %s3, %s390
          %s393 = sshll.u32 %s380, 4
          %s394 = int_to_ptr.vmem [resolvable:$true] %s393
          %396 = dma.vmem_to_hbm [thread:$0]  %s394, 384, %s391, %s377
        $region40: #{tpu_custom_call.1} parent=31 // pred_fallthru
          _
      $region32: #{tpu_custom_call.1} parent=5 // pred_fallthru
        _
      %p397 = scmp.le.s32.totalorder 2, %s15
      // Predicated region
      $region41: #{tpu_custom_call.1} parent=5 // pred_check
        %p398 = pneg %p397
      $region42: #{tpu_custom_call.1} parent=5 // pred_check_branch
        %400 = sbr.rel (%p398) target = $region44
      $region43: #{tpu_custom_call.1} parent=5 // pred_region
        %s401 = ssub.s32 %s15, 2
        // Predicated region
        $region45: #{tpu_custom_call.1} parent=43 // pred_check
          %p402 = pneg %p128
        $region46: #{tpu_custom_call.1} parent=43 // pred_check_branch
          %404 = sbr.rel (%p402) target = $region48
        $region47: #{tpu_custom_call.1} parent=43 // pred_region
          %s405 = sand.u32 %s113, 1
          %s406 = scalar_lea.sflag [#allocation4], %s405
          %s407 = sand.u32 %s113, 1
          %s408 = smul.addr %s407, 24
          %s409 = scalar_lea.vmem [#allocation5], %s408
          %410 = dma.done %s406, 384
        $region48: #{tpu_custom_call.1} parent=43 // pred_fallthru
          _
      $region44: #{tpu_custom_call.1} parent=5 // pred_fallthru
        _
    $region6: #{tpu_custom_call.1} parent=1 // loop_footer
      %s19 = sadd.s32 1, %s15
    $region7: #{tpu_custom_call.1} parent=1 // loop_footer_branch
      %14 = sbr.rel target = $region3
    $region8: #{tpu_custom_call.1} parent=1 // loop_exit
      _
    %411 = vsyncpa [#allocation3], 1
    %s412 = scalar_lea.sflag [#allocation3], 1
    %413 = vsyncpa %s412, 1
    %414 = vsyncpa [#allocation4], 1
    %s415 = scalar_lea.sflag [#allocation4], 1
    %416 = vsyncpa %s415, 1

</llo_original>
